<compile_context>
chip_gen: v7x
topology: tpu7x:2x2x1
jax: 0.10.0
libtpu: 0.0.40
codegen_flags: <defaults>
</compile_context>

<pallas_src>
import jax
import jax.numpy as jnp
from jax import lax
from jax.experimental import pallas as pl
from jax.experimental.pallas import tpu as pltpu

EPS = 1e-5                       # nn.BatchNorm2d default
_VMEM_LIMIT = 48 * 1024 * 1024   # safe on v5e/v6e (128 MiB phys) and v7x (64 MiB phys)
_BLOCK_TARGET = 4 * 1024 * 1024  # target bytes per grid step (x block + out block)
_FUSED_BUDGET = 6 * 1024 * 1024  # x + f32 y scratch + out must fit under this for fused path
_MAX_NB = 8                      # cap static unroll over the batch-block dim


# ----------------------------- fused single-call path -----------------------------

def _fused_kernel(w_ref, gamma_ref, beta_ref, x_ref, o_ref, y_ref):
    # w: (C_out, C_in) f32; gamma/beta: (C_out, 1) f32; x: (N, C_in, HW); y scratch f32.
    w = w_ref[...]
    n = x_ref.shape[0]
    m = x_ref.shape[0] * x_ref.shape[2]
    # 1x1 conv on the MXU, f32 accumulation.
    for b in range(n):
        y_ref[b] = jnp.dot(w, x_ref[b], preferred_element_type=jnp.float32)
    y = y_ref[...]                                                   # (N, C_out, HW)
    s1 = jnp.sum(jnp.sum(y, axis=2, keepdims=True), axis=0)          # (C_out, 1)
    mean = s1 / m
    d = y - mean[None]                                               # stable 2-pass variance
    var = jnp.sum(jnp.sum(d * d, axis=2, keepdims=True), axis=0) / m
    scale = gamma_ref[...] * lax.rsqrt(var + EPS)                    # (C_out, 1)
    shift = beta_ref[...] - mean * scale
    for b in range(n):
        o_ref[b] = (y_ref[b] * scale + shift).astype(o_ref.dtype)


def _fused_call(x3d, w2, gamma2, beta2, out_dtype):
    N, _, HW = x3d.shape
    C_out = w2.shape[0]
    vmem = pl.BlockSpec(memory_space=pltpu.MemorySpace.VMEM)
    return pl.pallas_call(
        _fused_kernel,
        out_shape=jax.ShapeDtypeStruct((N, C_out, HW), out_dtype),
        in_specs=[vmem, vmem, vmem, vmem],
        out_specs=vmem,
        scratch_shapes=[pltpu.VMEM((N, C_out, HW), jnp.float32)],
        compiler_params=pltpu.CompilerParams(vmem_limit_bytes=_VMEM_LIMIT),
    )(w2, gamma2, beta2, x3d)


# ----------------------------- general tiled two-pass path -----------------------------

def _stats_kernel(w_ref, x_ref, s1_ref, s2_ref):
    # Accumulate per-channel sum(y) and sum(y^2) of y = W @ x directly in the
    # VMEM-resident output block (constant index along the spatial grid axis).
    j = pl.program_id(1)

    @pl.when(j == 0)
    def _init():
        s1_ref[...] = jnp.zeros_like(s1_ref)
        s2_ref[...] = jnp.zeros_like(s2_ref)

    w = w_ref[...]                                                   # (C_out, C_in)
    s1 = jnp.zeros((w.shape[0], 1), jnp.float32)
    s2 = jnp.zeros((w.shape[0], 1), jnp.float32)
    for b in range(x_ref.shape[0]):                                  # nb small & static
        y = jnp.dot(w, x_ref[b], preferred_element_type=jnp.float32)  # (C_out, tl)
        s1 = s1 + jnp.sum(y, axis=1, keepdims=True)
        s2 = s2 + jnp.sum(y * y, axis=1, keepdims=True)
    s1_ref[...] += s1
    s2_ref[...] += s2


def _apply_kernel(w_ref, shift_ref, x_ref, o_ref):
    # Fused 1x1 conv + folded BatchNorm affine:
    #   out[c_out, m] = sum_c (scale[c_out]*W[c_out, c]) * x[c, m] + shift[c_out]
    w = w_ref[...]                                                   # (C_out, C_in), scale folded
    shift = shift_ref[...]                                           # (C_out, 1)
    for b in range(x_ref.shape[0]):
        y = jnp.dot(w, x_ref[b], preferred_element_type=jnp.float32)
        o_ref[b] = (y + shift).astype(o_ref.dtype)


def _choose_blocks(N, C_in, C_out, HW, itemsize):
    """Pick (nb, tl) so each grid step moves ~_BLOCK_TARGET bytes (x block + out block)."""
    per_col = (C_in + C_out) * itemsize  # bytes per spatial column per batch row
    nb = 1
    if HW * per_col < _BLOCK_TARGET:
        room = max(1, _BLOCK_TARGET // (HW * per_col))
        for d in range(1, min(N, _MAX_NB) + 1):
            if N % d == 0 and d <= room:
                nb = d
    if nb * HW * per_col <= _BLOCK_TARGET or HW % 128 != 0:
        # Whole spatial axis in one block (always legal: full-dim block).
        # TODO(synk): add masking for huge H*W that is not a multiple of 128.
        tl = HW
    else:
        max_cols = max(128, (_BLOCK_TARGET // (nb * per_col)) // 128 * 128)
        tl = 128
        t = 128
        while t <= min(HW, max_cols):
            if HW % t == 0:
                tl = t
            t += 128
    return nb, tl


# ----------------------------- public wrapper -----------------------------

def projection_layer(x_nchw, conv_w, gamma, beta, *, force_two_pass=False):
    N, C_in, H, W = x_nchw.shape
    C_out = conv_w.shape[0]
    HW = H * W
    M = N * HW
    out_dtype = x_nchw.dtype

    x3d = x_nchw.reshape(N, C_in, HW)                    # free reshape; output is NCHW already
    w2 = conv_w.reshape(C_out, C_in).astype(jnp.float32)
    gamma2 = gamma.reshape(C_out, 1).astype(jnp.float32)
    beta2 = beta.reshape(C_out, 1).astype(jnp.float32)
    itemsize = jnp.dtype(x3d.dtype).itemsize

    # ---- fused fast path: one HBM read of x, one write of out ----
    fused_bytes = N * C_in * HW * itemsize + 2 * N * C_out * HW * 4
    if (not force_two_pass) and fused_bytes <= _FUSED_BUDGET and N <= _MAX_NB:
        out3d = _fused_call(x3d, w2, gamma2, beta2, out_dtype)
        return out3d.reshape(N, C_out, H, W)

    # ---- general tiled path ----
    nb, tl = _choose_blocks(N, C_in, C_out, HW, itemsize)
    n_bb = N // nb
    n_tiles = HW // tl
    grid = (n_bb, n_tiles)

    # Pass 1: BN batch moments of y = W @ x, accumulated in VMEM; per-batch-block partials.
    part_s1, part_s2 = pl.pallas_call(
        _stats_kernel,
        out_shape=(jax.ShapeDtypeStruct((n_bb, C_out, 1), jnp.float32),
                   jax.ShapeDtypeStruct((n_bb, C_out, 1), jnp.float32)),
        grid=grid,
        in_specs=[pl.BlockSpec((C_out, C_in), lambda b, j: (0, 0)),
                  pl.BlockSpec((nb, C_in, tl), lambda b, j: (b, 0, j))],
        out_specs=(pl.BlockSpec((None, C_out, 1), lambda b, j: (b, 0, 0)),
                   pl.BlockSpec((None, C_out, 1), lambda b, j: (b, 0, 0))),
        compiler_params=pltpu.CompilerParams(
            dimension_semantics=("parallel", "arbitrary"),
            vmem_limit_bytes=_VMEM_LIMIT),
    )(w2, x3d)

    # Tiny wrapper math: fold BN batch stats into scale/shift.
    sum_y = jnp.sum(part_s1, axis=0)[:, 0]               # (C_out,)
    sum_y2 = jnp.sum(part_s2, axis=0)[:, 0]
    mean_y = sum_y / M
    var_y = jnp.maximum(sum_y2 / M - mean_y * mean_y, 0.0)   # clamp: guards f32 cancellation
    scale = gamma.astype(jnp.float32) * lax.rsqrt(var_y + EPS)
    shift = (beta.astype(jnp.float32) - mean_y * scale).reshape(C_out, 1)
    w_scaled = w2 * scale[:, None]                        # BN scale folded into weights

    # Pass 2: fused conv + BN apply, lane-dense output, no y intermediate in HBM.
    out3d = pl.pallas_call(
        _apply_kernel,
        out_shape=jax.ShapeDtypeStruct((N, C_out, HW), out_dtype),
        grid=grid,
        in_specs=[pl.BlockSpec((C_out, C_in), lambda b, j: (0, 0)),
                  pl.BlockSpec((C_out, 1), lambda b, j: (0, 0)),
                  pl.BlockSpec((nb, C_in, tl), lambda b, j: (b, 0, j))],
        out_specs=pl.BlockSpec((nb, C_out, tl), lambda b, j: (b, 0, j)),
        compiler_params=pltpu.CompilerParams(
            dimension_semantics=("parallel", "parallel"),
            vmem_limit_bytes=_VMEM_LIMIT),
    )(w_scaled, shift, x3d)

    return out3d.reshape(N, C_out, H, W)


def projection_layer_ref(x, conv_w, gamma, beta):
    # Pure-JAX reference: 1x1 conv (no bias) -> BatchNorm2d train-mode normalization.
    C_out, C_in = conv_w.shape[0], conv_w.shape[1]
    y = jnp.einsum('nchw,oc->nohw', x, conv_w.reshape(C_out, C_in))
    mean = y.mean(axis=(0, 2, 3), keepdims=True)
    var = y.var(axis=(0, 2, 3), keepdims=True)            # biased, like BN normalization
    return ((y - mean) * lax.rsqrt(var + EPS)
            * gamma.reshape(1, -1, 1, 1) + beta.reshape(1, -1, 1, 1))


if __name__ == "__main__":
    key = jax.random.PRNGKey(0)
    k_x, k_w, k_g, k_b = jax.random.split(key, 4)

    N, C_in, C_out, H, W = 2, 4, 8, 16, 16   # n_features_in=4, n_features_out=8
    x = jax.random.normal(k_x, (N, C_in, H, W), dtype=jnp.float32)
    conv_w = jax.random.normal(k_w, (C_out, C_in, 1, 1), dtype=jnp.float32) * 0.1
    gamma = 1.0 + 0.1 * jax.random.normal(k_g, (C_out,), dtype=jnp.float32)
    beta = 0.1 * jax.random.normal(k_b, (C_out,), dtype=jnp.float32)

    ref = projection_layer_ref(x, conv_w, gamma, beta)

    # Fused fast path (taken automatically at this size).
    out_fused = jax.block_until_ready(projection_layer(x, conv_w, gamma, beta))
    assert out_fused.shape == (N, C_out, H, W)
    assert jnp.allclose(out_fused, ref, rtol=1e-3, atol=1e-3), "fused path mismatch"

    # General tiled two-pass path (exercised explicitly for coverage).
    out_tiled = jax.block_until_ready(
        projection_layer(x, conv_w, gamma, beta, force_two_pass=True))
    assert out_tiled.shape == (N, C_out, H, W)
    assert jnp.allclose(out_tiled, ref, rtol=1e-3, atol=1e-3), "two-pass path mismatch"

    # TODO(synk): BatchNorm2d's running_mean/running_var buffer updates (training
    # side-state) are not reproduced; they do not affect this forward output.

    print("KERNEL_OK")
</pallas_src>

<mosaic_0001>
module attributes {stable_mosaic.version = 11 : i64} {
  func.func @_fused_kernel(%arg0: memref<8x4xf32, #tpu.memory_space<vmem>>, %arg1: memref<8x1xf32, #tpu.memory_space<vmem>>, %arg2: memref<8x1xf32, #tpu.memory_space<vmem>>, %arg3: memref<2x4x256xf32, #tpu.memory_space<vmem>>, %arg4: memref<2x8x256xf32, #tpu.memory_space<vmem>>, %arg5: memref<2x8x256xf32, #tpu.memory_space<vmem>>) attributes {dimension_semantics = [], scalar_prefetch = 0 : i64, scratch_operands = 1 : i64, tpu.core_type = #tpu.core_type<tc>} {
    %c0 = arith.constant 0 : index
    %c0_0 = arith.constant 0 : index
    %0 = vector.load %arg0[%c0, %c0_0] : memref<8x4xf32, #tpu.memory_space<vmem>>, vector<8x4xf32>
    %c0_1 = arith.constant 0 : index
    %c0_2 = arith.constant 0 : index
    %c0_3 = arith.constant 0 : index
    %1 = vector.load %arg3[%c0_1, %c0_2, %c0_3] : memref<2x4x256xf32, #tpu.memory_space<vmem>>, vector<1x4x256xf32>
    %2 = vector.shape_cast %1 : vector<1x4x256xf32> to vector<4x256xf32>
    %cst = arith.constant dense<0.000000e+00> : vector<8x256xf32>
    %3 = tpu.matmul %0, %2, %cst {dimension_numbers = #tpu.dot_dimension_numbers<[1], [0], [0], [1], [0, 0, 1, 1], [], []>} : vector<8x4xf32>, vector<4x256xf32>, vector<8x256xf32> -> vector<8x256xf32>
    %c0_4 = arith.constant 0 : index
    %c0_5 = arith.constant 0 : index
    %c0_6 = arith.constant 0 : index
    %4 = vector.load %arg5[%c0_4, %c0_5, %c0_6] : memref<2x8x256xf32, #tpu.memory_space<vmem>>, vector<1x8x256xf32>
    %5 = vector.shape_cast %4 : vector<1x8x256xf32> to vector<8x256xf32>
    %6 = vector.shape_cast %3 : vector<8x256xf32> to vector<1x8x256xf32>
    tpu.vector_store %arg5[%c0_4, %c0_5, %c0_6], %6 {strides = array<i32>} : memref<2x8x256xf32, #tpu.memory_space<vmem>>, vector<1x8x256xf32>,
    %c1 = arith.constant 1 : index
    %c0_7 = arith.constant 0 : index
    %c0_8 = arith.constant 0 : index
    %7 = vector.load %arg3[%c1, %c0_7, %c0_8] : memref<2x4x256xf32, #tpu.memory_space<vmem>>, vector<1x4x256xf32>
    %8 = vector.shape_cast %7 : vector<1x4x256xf32> to vector<4x256xf32>
    %cst_9 = arith.constant dense<0.000000e+00> : vector<8x256xf32>
    %9 = tpu.matmul %0, %8, %cst_9 {dimension_numbers = #tpu.dot_dimension_numbers<[1], [0], [0], [1], [0, 0, 1, 1], [], []>} : vector<8x4xf32>, vector<4x256xf32>, vector<8x256xf32> -> vector<8x256xf32>
    %c1_10 = arith.constant 1 : index
    %c0_11 = arith.constant 0 : index
    %c0_12 = arith.constant 0 : index
    %10 = vector.load %arg5[%c1_10, %c0_11, %c0_12] : memref<2x8x256xf32, #tpu.memory_space<vmem>>, vector<1x8x256xf32>
    %11 = vector.shape_cast %10 : vector<1x8x256xf32> to vector<8x256xf32>
    %12 = vector.shape_cast %9 : vector<8x256xf32> to vector<1x8x256xf32>
    tpu.vector_store %arg5[%c1_10, %c0_11, %c0_12], %12 {strides = array<i32>} : memref<2x8x256xf32, #tpu.memory_space<vmem>>, vector<1x8x256xf32>,
    %c0_13 = arith.constant 0 : index
    %c0_14 = arith.constant 0 : index
    %c0_15 = arith.constant 0 : index
    %13 = vector.load %arg5[%c0_13, %c0_14, %c0_15] : memref<2x8x256xf32, #tpu.memory_space<vmem>>, vector<2x8x256xf32>
    %cst_16 = arith.constant dense<0.000000e+00> : vector<2x8xf32>
    %14 = vector.multi_reduction <add>, %13, %cst_16 [2] : vector<2x8x256xf32> to vector<2x8xf32>
    %15 = vector.shape_cast %14 : vector<2x8xf32> to vector<2x8x1xf32>
    %cst_17 = arith.constant dense<0.000000e+00> : vector<8x1xf32>
    %16 = vector.multi_reduction <add>, %15, %cst_17 [0] : vector<2x8x1xf32> to vector<8x1xf32>
    %cst_18 = arith.constant 5.120000e+02 : f32
    %17 = vector.broadcast %cst_18 : f32 to vector<8x1xf32>
    %18 = arith.divf %16, %17 : vector<8x1xf32>
    %19 = vector.shape_cast %18 : vector<8x1xf32> to vector<1x8x1xf32>
    %20 = vector.broadcast %19 : vector<1x8x1xf32> to vector<2x8x256xf32>
    %21 = arith.subf %13, %20 : vector<2x8x256xf32>
    %22 = arith.mulf %21, %21 : vector<2x8x256xf32>
    %cst_19 = arith.constant dense<0.000000e+00> : vector<2x8xf32>
    %23 = vector.multi_reduction <add>, %22, %cst_19 [2] : vector<2x8x256xf32> to vector<2x8xf32>
    %24 = vector.shape_cast %23 : vector<2x8xf32> to vector<2x8x1xf32>
    %cst_20 = arith.constant dense<0.000000e+00> : vector<8x1xf32>
    %25 = vector.multi_reduction <add>, %24, %cst_20 [0] : vector<2x8x1xf32> to vector<8x1xf32>
    %cst_21 = arith.constant 5.120000e+02 : f32
    %26 = vector.broadcast %cst_21 : f32 to vector<8x1xf32>
    %27 = arith.divf %25, %26 : vector<8x1xf32>
    %c0_22 = arith.constant 0 : index
    %c0_23 = arith.constant 0 : index
    %28 = vector.load %arg1[%c0_22, %c0_23] : memref<8x1xf32, #tpu.memory_space<vmem>>, vector<8x1xf32>
    %cst_24 = arith.constant 9.99999974E-6 : f32
    %29 = vector.broadcast %cst_24 : f32 to vector<8x1xf32>
    %30 = arith.addf %27, %29 : vector<8x1xf32>
    %31 = math.rsqrt %30 : vector<8x1xf32>
    %32 = arith.mulf %28, %31 : vector<8x1xf32>
    %c0_25 = arith.constant 0 : index
    %c0_26 = arith.constant 0 : index
    %33 = vector.load %arg2[%c0_25, %c0_26] : memref<8x1xf32, #tpu.memory_space<vmem>>, vector<8x1xf32>
    %34 = arith.mulf %18, %32 : vector<8x1xf32>
    %35 = arith.subf %33, %34 : vector<8x1xf32>
    %c0_27 = arith.constant 0 : index
    %c0_28 = arith.constant 0 : index
    %c0_29 = arith.constant 0 : index
    %36 = vector.load %arg5[%c0_27, %c0_28, %c0_29] : memref<2x8x256xf32, #tpu.memory_space<vmem>>, vector<1x8x256xf32>
    %37 = vector.shape_cast %36 : vector<1x8x256xf32> to vector<8x256xf32>
    %38 = vector.broadcast %32 : vector<8x1xf32> to vector<8x256xf32>
    %39 = arith.mulf %37, %38 : vector<8x256xf32>
    %40 = vector.broadcast %35 : vector<8x1xf32> to vector<8x256xf32>
    %41 = arith.addf %39, %40 : vector<8x256xf32>
    %c0_30 = arith.constant 0 : index
    %c0_31 = arith.constant 0 : index
    %c0_32 = arith.constant 0 : index
    %42 = vector.load %arg4[%c0_30, %c0_31, %c0_32] : memref<2x8x256xf32, #tpu.memory_space<vmem>>, vector<1x8x256xf32>
    %43 = vector.shape_cast %42 : vector<1x8x256xf32> to vector<8x256xf32>
    %44 = vector.shape_cast %41 : vector<8x256xf32> to vector<1x8x256xf32>
    tpu.vector_store %arg4[%c0_30, %c0_31, %c0_32], %44 {strides = array<i32>} : memref<2x8x256xf32, #tpu.memory_space<vmem>>, vector<1x8x256xf32>,
    %c1_33 = arith.constant 1 : index
    %c0_34 = arith.constant 0 : index
    %c0_35 = arith.constant 0 : index
    %45 = vector.load %arg5[%c1_33, %c0_34, %c0_35] : memref<2x8x256xf32, #tpu.memory_space<vmem>>, vector<1x8x256xf32>
    %46 = vector.shape_cast %45 : vector<1x8x256xf32> to vector<8x256xf32>
    %47 = vector.broadcast %32 : vector<8x1xf32> to vector<8x256xf32>
    %48 = arith.mulf %46, %47 : vector<8x256xf32>
    %49 = vector.broadcast %35 : vector<8x1xf32> to vector<8x256xf32>
    %50 = arith.addf %48, %49 : vector<8x256xf32>
    %c1_36 = arith.constant 1 : index
    %c0_37 = arith.constant 0 : index
    %c0_38 = arith.constant 0 : index
    %51 = vector.load %arg4[%c1_36, %c0_37, %c0_38] : memref<2x8x256xf32, #tpu.memory_space<vmem>>, vector<1x8x256xf32>
    %52 = vector.shape_cast %51 : vector<1x8x256xf32> to vector<8x256xf32>
    %53 = vector.shape_cast %50 : vector<8x256xf32> to vector<1x8x256xf32>
    tpu.vector_store %arg4[%c1_36, %c0_37, %c0_38], %53 {strides = array<i32>} : memref<2x8x256xf32, #tpu.memory_space<vmem>>, vector<1x8x256xf32>,
    return
  }
}

</mosaic_0001>

<llo_original>
// kernel: tpu_custom_call.1
$region0: #{tpu_custom_call.1}
  #allocation0 [shape = 'u32[]', space=smem, size = 0x4, offset = 0x4, fixed_abs, tag = 'smem constant byte address 0x4 - core index']
  #allocation1 [shape = 'u32[144,128]{1,0:T(1,128)}', space=vmem, size = 0x12000, scoped, tag = 'internal scratch']
  #allocation2 [shape = 'f32[2,8,256]{2,1,0:T(8,128)}', space=vmem, size = 0x4000, scoped, tag = 'scratch operand']
  %s0 = inlined_call_operand.vmem [shape: f32[8,4], index: 0, kind: input, shape index: {}]
  %s1 = inlined_call_operand.vmem [shape: f32[8,1], index: 1, kind: input, shape index: {}]
  %s2 = inlined_call_operand.vmem [shape: f32[8,1], index: 2, kind: input, shape index: {}]
  %s3 = inlined_call_operand.vmem [shape: f32[2,4,256], index: 3, kind: input, shape index: {}]
  %s4 = inlined_call_operand.hbm [shape: f32[2,8,256], index: 4, kind: output, shape index: {}]
  %s5 = sld [smem:[#allocation0]]
  $region26: #{tpu_custom_call.1} parent=0
    _
  %s7 = ssub.s32 1, %s5
  %s8 = scalar_select 0, %s7, %s5
  $region1: #{tpu_custom_call.1} parent=0
    #allocation3 [shape = 'u8[16384]{0}', space=vmem, size = 0x4000, scoped, tag = 'output window, operand 0, single buffered']
    #allocation4 [shape = 's32[1]{0}', space=sflag, size = 0x4, scoped, tag = 'scoped memory for tpu_custom_call.1']
    %9 = vsyncpa [#allocation4], 0
    // Predicated region
    $region2: #{tpu_custom_call.1} parent=1 // pred_check
      _
    $region3: #{tpu_custom_call.1} parent=1 // pred_check_branch
      %11 = sbr.rel (0) target = $region5
    $region4: #{tpu_custom_call.1} parent=1 // pred_region
      _
    $region5: #{tpu_custom_call.1} parent=1 // pred_fallthru
      _
    // Predicated region
    $region6: #{tpu_custom_call.1} parent=1 // pred_check
      _
    $region7: #{tpu_custom_call.1} parent=1 // pred_check_branch
      %13 = sbr.rel (0) target = $region9
    $region8: #{tpu_custom_call.1} parent=1 // pred_region
      _
    $region9: #{tpu_custom_call.1} parent=1 // pred_fallthru
      _
    // Predicated region
    $region10: #{tpu_custom_call.1} parent=1 // pred_check
      _
    $region11: #{tpu_custom_call.1} parent=1 // pred_check_branch
      %15 = sbr.rel (0) target = $region13
    $region12: #{tpu_custom_call.1} parent=1 // pred_region
      _
    $region13: #{tpu_custom_call.1} parent=1 // pred_fallthru
      _
    // Predicated region
    $region14: #{tpu_custom_call.1} parent=1 // pred_check
      _
    $region15: #{tpu_custom_call.1} parent=1 // pred_check_branch
      %17 = sbr.rel (0) target = $region17
    $region16: #{tpu_custom_call.1} parent=1 // pred_region
      _
    $region17: #{tpu_custom_call.1} parent=1 // pred_fallthru
      _
    %v18 = vld [vmem:[%s0] sm:$0xff]
    %v19 = vld [vmem:[%s3] sm:$0xff]
    %v21 = vcombine.high %v19, %v19
    %vm22 = vcmask 31744
    %v24 = vsel %vm22, %v18, 0
    %vm26 = vcmask 1043456
    %v27 = vsel %vm26, %v19, 0
    %v29 = vsel %vm26, %v21, 0
    %31 = vmatprep.subr.mxu0 %v29
    %32 = vmatpush1.msra.mxu0 %v27
    %33 = vmatprep.subr.mxu0 0.0
    %34 = vmatpush1.msra.mxu0 0.0
    %35 = vmatprep.subr.mxu0 0.0
    %36 = vmatpush1.msra.mxu0 0.0
    %37 = vmatprep.subr.mxu0 0.0
    %38 = vmatpush1.msra.mxu0 0.0
    %39 = vmatprep.subr.mxu0 0.0
    %40 = vmatpush1.msra.mxu0 0.0
    %41 = vmatprep.subr.mxu0 0.0
    %42 = vmatpush1.msra.mxu0 0.0
    %43 = vmatprep.subr.mxu0 0.0
    %44 = vmatpush1.msra.mxu0 0.0
    %45 = vmatprep.subr.mxu0 0.0
    %46 = vmatpush1.msra.mxu0 0.0
    %47 = vmatprep.subr.mxu0 0.0
    %48 = vmatpush1.msra.mxu0 0.0
    %49 = vmatprep.subr.mxu0 0.0
    %50 = vmatpush1.msra.mxu0 0.0
    %51 = vmatprep.subr.mxu0 0.0
    %52 = vmatpush1.msra.mxu0 0.0
    %53 = vmatprep.subr.mxu0 0.0
    %54 = vmatpush1.msra.mxu0 0.0
    %55 = vmatprep.subr.mxu0 0.0
    %56 = vmatpush1.msra.mxu0 0.0
    %57 = vmatprep.subr.mxu0 0.0
    %58 = vmatpush1.msra.mxu0 0.0
    %59 = vmatprep.subr.mxu0 0.0
    %60 = vmatpush1.msra.mxu0 0.0
    %61 = vmatprep.subr.mxu0 0.0
    %62 = vmatpush1.msra.mxu0 0.0
    %63 = vmatprep.subr.mxu0 0.0
    %64 = vmatpush1.msra.mxu0 0.0
    %65 = vmatprep.subr.mxu0 0.0
    %66 = vmatpush1.msra.mxu0 0.0
    %67 = vmatprep.subr.mxu0 0.0
    %68 = vmatpush1.msra.mxu0 0.0
    %69 = vmatprep.subr.mxu0 0.0
    %70 = vmatpush1.msra.mxu0 0.0
    %71 = vmatprep.subr.mxu0 0.0
    %72 = vmatpush1.msra.mxu0 0.0
    %73 = vmatprep.subr.mxu0 0.0
    %74 = vmatpush1.msra.mxu0 0.0
    %75 = vmatprep.subr.mxu0 0.0
    %76 = vmatpush1.msra.mxu0 0.0
    %77 = vmatprep.subr.mxu0 0.0
    %78 = vmatpush1.msra.mxu0 0.0
    %79 = vmatprep.subr.mxu0 0.0
    %80 = vmatpush1.msra.mxu0 0.0
    %81 = vmatprep.subr.mxu0 0.0
    %82 = vmatpush1.msra.mxu0 0.0
    %83 = vmatprep.subr.mxu0 0.0
    %84 = vmatpush1.msra.mxu0 0.0
    %85 = vmatprep.subr.mxu0 0.0
    %86 = vmatpush1.msra.mxu0 0.0
    %87 = vmatprep.subr.mxu0 0.0
    %88 = vmatpush1.msra.mxu0 0.0
    %89 = vmatprep.subr.mxu0 0.0
    %90 = vmatpush1.msra.mxu0 0.0
    %91 = vmatprep.subr.mxu0 0.0
    %92 = vmatpush1.msra.mxu0 0.0
    %93 = vmatprep.subr.mxu0 0.0
    %94 = vmatpush1.msra.mxu0 0.0
    %95 = vmatprep.mubr.f32.mxu0 0.0
    %96 = vmatmul.mubr.f32.gmra.mrb[0].mxu0 %v24
    %v97 = vpop.f32.mrb[0].mxu0
    %v98 = vadd.f32 0.0, %v97
    %v99 = vpop.f32.mrb[0].mxu0
    %v100 = vadd.f32 0.0, %v99
    %101 = vdwg.mxu0
    %102 = vst [vmem:[#allocation2] sm:$0xff] %v98
    %103 = vst [vmem:[#allocation2 + $0x8] sm:$0xff] %v100
    %s104 = scalar_lea.vmem %s3, 8
    %v105 = vld [vmem:[%s104] sm:$0xff]
    %v107 = vcombine.high %v105, %v105
    %v108 = vsel %vm26, %v105, 0
    %v110 = vsel %vm26, %v107, 0
    %112 = vmatprep.subr.mxu0 %v110
    %113 = vmatpush1.msra.mxu0 %v108
    %114 = vmatprep.subr.mxu0 0.0
    %115 = vmatpush1.msra.mxu0 0.0
    %116 = vmatprep.subr.mxu0 0.0
    %117 = vmatpush1.msra.mxu0 0.0
    %118 = vmatprep.subr.mxu0 0.0
    %119 = vmatpush1.msra.mxu0 0.0
    %120 = vmatprep.subr.mxu0 0.0
    %121 = vmatpush1.msra.mxu0 0.0
    %122 = vmatprep.subr.mxu0 0.0
    %123 = vmatpush1.msra.mxu0 0.0
    %124 = vmatprep.subr.mxu0 0.0
    %125 = vmatpush1.msra.mxu0 0.0
    %126 = vmatprep.subr.mxu0 0.0
    %127 = vmatpush1.msra.mxu0 0.0
    %128 = vmatprep.subr.mxu0 0.0
    %129 = vmatpush1.msra.mxu0 0.0
    %130 = vmatprep.subr.mxu0 0.0
    %131 = vmatpush1.msra.mxu0 0.0
    %132 = vmatprep.subr.mxu0 0.0
    %133 = vmatpush1.msra.mxu0 0.0
    %134 = vmatprep.subr.mxu0 0.0
    %135 = vmatpush1.msra.mxu0 0.0
    %136 = vmatprep.subr.mxu0 0.0
    %137 = vmatpush1.msra.mxu0 0.0
    %138 = vmatprep.subr.mxu0 0.0
    %139 = vmatpush1.msra.mxu0 0.0
    %140 = vmatprep.subr.mxu0 0.0
    %141 = vmatpush1.msra.mxu0 0.0
    %142 = vmatprep.subr.mxu0 0.0
    %143 = vmatpush1.msra.mxu0 0.0
    %144 = vmatprep.subr.mxu0 0.0
    %145 = vmatpush1.msra.mxu0 0.0
    %146 = vmatprep.subr.mxu0 0.0
    %147 = vmatpush1.msra.mxu0 0.0
    %148 = vmatprep.subr.mxu0 0.0
    %149 = vmatpush1.msra.mxu0 0.0
    %150 = vmatprep.subr.mxu0 0.0
    %151 = vmatpush1.msra.mxu0 0.0
    %152 = vmatprep.subr.mxu0 0.0
    %153 = vmatpush1.msra.mxu0 0.0
    %154 = vmatprep.subr.mxu0 0.0
    %155 = vmatpush1.msra.mxu0 0.0
    %156 = vmatprep.subr.mxu0 0.0
    %157 = vmatpush1.msra.mxu0 0.0
    %158 = vmatprep.subr.mxu0 0.0
    %159 = vmatpush1.msra.mxu0 0.0
    %160 = vmatprep.subr.mxu0 0.0
    %161 = vmatpush1.msra.mxu0 0.0
    %162 = vmatprep.subr.mxu0 0.0
    %163 = vmatpush1.msra.mxu0 0.0
    %164 = vmatprep.subr.mxu0 0.0
    %165 = vmatpush1.msra.mxu0 0.0
    %166 = vmatprep.subr.mxu0 0.0
    %167 = vmatpush1.msra.mxu0 0.0
    %168 = vmatprep.subr.mxu0 0.0
    %169 = vmatpush1.msra.mxu0 0.0
    %170 = vmatprep.subr.mxu0 0.0
    %171 = vmatpush1.msra.mxu0 0.0
    %172 = vmatprep.subr.mxu0 0.0
    %173 = vmatpush1.msra.mxu0 0.0
    %174 = vmatprep.subr.mxu0 0.0
    %175 = vmatpush1.msra.mxu0 0.0
    %176 = vmatprep.mubr.f32.mxu0 0.0
    %177 = vmatmul.mubr.f32.gmra.mrb[0].mxu0 %v24
    %v178 = vpop.f32.mrb[0].mxu0
    %v179 = vadd.f32 0.0, %v178
    %v180 = vpop.f32.mrb[0].mxu0
    %v181 = vadd.f32 0.0, %v180
    %182 = vdwg.mxu0
    %s183 = scalar_lea.vmem [#allocation2], 16
    %184 = vst [vmem:[%s183] sm:$0xff] %v179
    %185 = vst [vmem:[%s183 + $0x8] sm:$0xff] %v181
    %v186 = vld [vmem:[#allocation2] sm:$0xff]
    %v187 = vld [vmem:[#allocation2 + $0x8] sm:$0xff]
    %v188 = vld [vmem:[#allocation2 + $0x10] sm:$0xff]
    %v189 = vld [vmem:[#allocation2 + $0x18] sm:$0xff]
    %v190 = vadd.f32 %v186, %v187
    %191 = vadd.xlane.f32.xlu0 %v190
    %v192 = vpop.xlane.xlu0 %191
    %v193 = vadd.f32 %v188, %v189
    %194 = vadd.xlane.f32.xlu0 %v193
    %v195 = vpop.xlane.xlu0 %194
    %v196 = vadd.f32 %v192, %v195
    %v197 = vrcp.pop 512.0
    %v198 = vmul.f32 %v196, %v197
    %v199 = vsub.f32 %v186, %v198
    %v200 = vsub.f32 %v187, %v198
    %v201 = vsub.f32 %v188, %v198
    %v202 = vsub.f32 %v189, %v198
    %v203 = vmul.f32 %v199, %v199
    %v204 = vmul.f32 %v200, %v200
    %v205 = vmul.f32 %v201, %v201
    %v206 = vmul.f32 %v202, %v202
    %v207 = vadd.f32 %v203, %v204
    %208 = vadd.xlane.f32.xlu0 %v207
    %v209 = vpop.xlane.xlu0 %208
    %v210 = vadd.f32 %v205, %v206
    %211 = vadd.xlane.f32.xlu0 %v210
    %v212 = vpop.xlane.xlu0 %211
    %v213 = vadd.f32 %v209, %v212
    %v214 = vmul.f32 %v213, %v197
    %v215 = vld [vmem:[%s1] sm:$0xff]
    %v216 = vadd.f32 %v214, 1e-05
    %v217 = vrsqrt.pop %v216
    %v218 = vmul.f32 %v215, %v217
    %v219 = vld [vmem:[%s2] sm:$0xff]
    %v220 = vmul.f32 %v198, %v218
    %v221 = vsub.f32 %v219, %v220
    %v222 = vld [vmem:[#allocation2] sm:$0xff]
    %v223 = vld [vmem:[#allocation2 + $0x8] sm:$0xff]
    %225 = vset.pattern.permute.xlu0 0
    %226 = vperm.xlu0 %225, %v218
    %v227 = vpop.permute.xlu0 %226
    %v229 = vmul.f32 %v222, %v227
    %v230 = vmul.f32 %v223, %v227
    %232 = vset.pattern.permute.xlu0 0
    %233 = vperm.xlu0 %232, %v221
    %v234 = vpop.permute.xlu0 %233
    %v236 = vadd.f32 %v229, %v234
    %v237 = vadd.f32 %v230, %v234
    %238 = vst [vmem:[#allocation3] sm:$0xff] %v236
    %239 = vst [vmem:[#allocation3 + $0x8] sm:$0xff] %v237
    %v240 = vld [vmem:[%s183] sm:$0xff]
    %v241 = vld [vmem:[%s183 + $0x8] sm:$0xff]
    %v242 = vmul.f32 %v240, %v227
    %v243 = vmul.f32 %v241, %v227
    %v244 = vadd.f32 %v242, %v234
    %v245 = vadd.f32 %v243, %v234
    %s246 = scalar_lea.vmem [#allocation3], 16
    %247 = vst [vmem:[%s246] sm:$0xff] %v244
    %248 = vst [vmem:[%s246 + $0x8] sm:$0xff] %v245
    // Predicated region
    $region18: #{tpu_custom_call.1} parent=1 // pred_check
      _
    $region19: #{tpu_custom_call.1} parent=1 // pred_check_branch
      %250 = sbr.rel (0) target = $region21
    $region20: #{tpu_custom_call.1} parent=1 // pred_region
      %s252 = ssub.s32 512, 512
      %253 = vsyncadd [#allocation4], %s252
      %s254 = sshll.u32 [#allocation3], 4
      %s255 = int_to_ptr.vmem [resolvable:$true] %s254
      %260 = dma.vmem_to_hbm [thread:$0]  %s255, 512, %s4, [#allocation4], 256, 256, 16
    $region21: #{tpu_custom_call.1} parent=1 // pred_fallthru
      _
    // Predicated region
    $region22: #{tpu_custom_call.1} parent=1 // pred_check
      _
    $region23: #{tpu_custom_call.1} parent=1 // pred_check_branch
      %262 = sbr.rel (0) target = $region25
    $region24: #{tpu_custom_call.1} parent=1 // pred_region
      %263 = dma.done [#allocation4], 512
    $region25: #{tpu_custom_call.1} parent=1 // pred_fallthru
      _
    %264 = vsyncpa [#allocation4], 1

</llo_original>
